<compile_context>
chip_gen: v7x
topology: tpu7x:2x2x1
jax: 0.10.0
libtpu: 0.0.40
codegen_flags: <defaults>
</compile_context>

<pallas_src>
from functools import partial

import numpy as np
import jax
import jax.numpy as jnp
from jax.experimental import pallas as pl
from jax.experimental.pallas import tpu as pltpu

# static module config (PyTorch BceLoss defaults)
FOCAL = True
DROP_NAN = True
ALPHA = 0.25
GAMMA = 2.0

_LANES = 128
_SUBLANES = 8
_LOG_CLAMP = -100.0  # torch binary_cross_entropy clamps each log term at -100
_BLOCK_ROWS = 1024   # (1024, 128) f32 tile = 512 KiB


def _bce_focal_kernel(p_ref, t_ref, out_ref, acc_ref, *, n_valid, block_rows,
                      blocks_per_core, focal, drop_nan, alpha, gamma,
                      binary_targets):
    c = pl.program_id(0)          # core split ("parallel")
    b = pl.program_id(1)          # row-block within this core ("arbitrary")

    @pl.when(b == 0)
    def _():
        acc_ref[...] = jnp.zeros_like(acc_ref)

    p = p_ref[...].astype(jnp.float32)   # (block_rows, 128)
    t = t_ref[...].astype(jnp.float32)
    rows, lanes = p.shape

    # validity mask from the UNCLAMPED global flat index (the index_map clamps
    # the DMA so out-of-range blocks re-read valid data, masked to zero here).
    global_block = c * blocks_per_core + b
    start = global_block * block_rows * lanes
    row_idx = jax.lax.broadcasted_iota(jnp.int32, (rows, lanes), 0)
    col_idx = jax.lax.broadcasted_iota(jnp.int32, (rows, lanes), 1)
    mask = (start + row_idx * lanes + col_idx) < n_valid
    if drop_nan:
        mask = jnp.logical_and(mask, jnp.logical_not(jnp.isnan(t)))

    # neutral values at masked positions so no NaN/Inf leaks into the sums
    t_safe = jnp.where(mask, t, 0.0)
    p_safe = jnp.where(mask, p, 0.5)

    log_p = jnp.maximum(jnp.log(p_safe), _LOG_CLAMP)
    log_1mp = jnp.maximum(jnp.log(1.0 - p_safe), _LOG_CLAMP)
    loss = -(t_safe * log_p + (1.0 - t_safe) * log_1mp)

    if focal:
        if binary_targets:
            # exp(-loss) = p^t (1-p)^(1-t) == t*p + (1-t)*(1-p) for t in {0,1};
            # saves one EUP transcendental per element (difference vs the
            # clamped form is below f32 epsilon of 1.0).
            exp_neg = t_safe * p_safe + (1.0 - t_safe) * (1.0 - p_safe)
        else:
            exp_neg = jnp.exp(-loss)
        m = 1.0 - exp_neg
        mod = m * m if gamma == 2.0 else m ** gamma
        loss = alpha * mod * loss

    loss = jnp.where(mask, loss, 0.0)

    # accumulate into a full-vreg (8,128) slab: pure VALU adds, no per-tile XLU
    acc_ref[0] += loss.reshape(rows // _SUBLANES, _SUBLANES, lanes).sum(axis=0)
    if drop_nan:
        acc_ref[1] += mask.astype(jnp.float32).reshape(
            rows // _SUBLANES, _SUBLANES, lanes).sum(axis=0)

    @pl.when(b == pl.num_programs(1) - 1)
    def _():
        out_ref[0] = acc_ref[...]


def bce_loss(inputs, targets, *, focal=FOCAL, drop_nan=DROP_NAN, alpha=ALPHA,
             gamma=GAMMA, binary_targets=True, block_rows=_BLOCK_ROWS,
             num_cores=2):
    assert inputs.shape == targets.shape
    n = int(np.prod(inputs.shape))
    assert 0 < n < 2**31, "flat-index mask is int32"

    align = _SUBLANES * _LANES                      # 1024
    n_pad = pl.cdiv(n, align) * align
    p = inputs.reshape(-1)
    t = targets.reshape(-1)
    if n_pad != n:
        # only triggers when numel is not 1024-aligned; padded region is
        # excluded by the in-kernel flat-index mask
        p = jnp.pad(p, (0, n_pad - n))
        t = jnp.pad(t, (0, n_pad - n))

    rows = n_pad // _LANES                          # multiple of 8
    p2 = p.reshape(rows, _LANES)                    # lane-dense, native dtype
    t2 = t.reshape(rows, _LANES)

    br = min(block_rows, rows)                      # multiple of 8
    nblocks = pl.cdiv(rows, br)
    bpc = pl.cdiv(nblocks, num_cores)               # row-blocks per core

    # clamp so out-of-range blocks (uneven core split / grid edge) DMA valid
    # data; their contribution is zeroed by the mask inside the kernel.
    in_map = lambda c, b: (jnp.minimum(c * bpc + b, nblocks - 1), 0)

    kernel = partial(_bce_focal_kernel, n_valid=n, block_rows=br,
                     blocks_per_core=bpc, focal=focal, drop_nan=drop_nan,
                     alpha=alpha, gamma=gamma, binary_targets=binary_targets)

    partials = pl.pallas_call(
        kernel,
        out_shape=jax.ShapeDtypeStruct((num_cores, 2, _SUBLANES, _LANES),
                                       jnp.float32),
        grid_spec=pltpu.PrefetchScalarGridSpec(
            num_scalar_prefetch=0,
            grid=(num_cores, bpc),
            in_specs=[pl.BlockSpec((br, _LANES), in_map),
                      pl.BlockSpec((br, _LANES), in_map)],
            out_specs=pl.BlockSpec((1, 2, _SUBLANES, _LANES),
                                   lambda c, b: (c, 0, 0, 0)),
            scratch_shapes=[pltpu.VMEM((2, _SUBLANES, _LANES), jnp.float32)],
        ),
        compiler_params=pltpu.CompilerParams(
            dimension_semantics=("parallel", "arbitrary")),
    )(p2, t2)

    # combine per-core partials (tiny) and take the mean over the valid subset
    total = jnp.sum(partials[:, 0])
    if drop_nan:
        count = jnp.sum(partials[:, 1])
    else:
        count = jnp.float32(n)
    return total / count


def bce_loss_ref(inputs, targets):
    # pure-JAX reference mirroring the PyTorch module
    if DROP_NAN:
        valid = jnp.logical_not(jnp.isnan(targets))
    else:
        valid = jnp.ones_like(targets, dtype=bool)
    t = jnp.where(valid, targets, 0.0)
    p = jnp.where(valid, inputs, 0.5)
    loss = -(t * jnp.maximum(jnp.log(p), _LOG_CLAMP)
             + (1.0 - t) * jnp.maximum(jnp.log(1.0 - p), _LOG_CLAMP))
    if FOCAL:
        loss = ALPHA * (1.0 - jnp.exp(-loss)) ** GAMMA * loss
    return jnp.sum(jnp.where(valid, loss, 0.0)) / jnp.sum(valid.astype(jnp.float32))


if __name__ == "__main__":
    key = jax.random.PRNGKey(0)
    k_in, k_tgt, k_nan = jax.random.split(key, 3)
    shape = (2, 4, 16, 16)   # 2048 elements -> (16, 128) lane-dense, no padding

    inputs = jax.random.uniform(k_in, shape, jnp.float32, minval=0.01, maxval=0.99)
    targets = jax.random.bernoulli(k_tgt, 0.5, shape).astype(jnp.float32)
    # sprinkle some NaN targets to exercise drop_nan
    targets = jnp.where(jax.random.uniform(k_nan, shape) < 0.1, jnp.nan, targets)

    loss = jax.jit(bce_loss)(inputs, targets)
    jax.block_until_ready(loss)
    assert loss.shape == () and loss.dtype == jnp.float32

    ref = bce_loss_ref(inputs, targets)
    np.testing.assert_allclose(np.asarray(loss), np.asarray(ref),
                               rtol=1e-4, atol=1e-6)
    print("KERNEL_OK")
</pallas_src>

<mosaic_0001>
module attributes {stable_mosaic.version = 11 : i64} {
  func.func @_bce_focal_kernel(%arg0: i32, %arg1: i32, %arg2: memref<16x128xf32, #tpu.memory_space<vmem>>, %arg3: memref<16x128xf32, #tpu.memory_space<vmem>>, %arg4: memref<1x2x8x128xf32, #tpu.memory_space<vmem>>, %arg5: memref<2x8x128xf32, #tpu.memory_space<vmem>>) attributes {dimension_semantics = [#tpu.dimension_semantics<parallel>, #tpu.dimension_semantics<arbitrary>], iteration_bounds = array<i64: 2, 1>, scalar_prefetch = 0 : i64, scratch_operands = 1 : i64, tpu.core_type = #tpu.core_type<tc>, window_params = [{transform_indices = @transform_0, window_bounds = array<i64: 16, 128>}, {transform_indices = @transform_1, window_bounds = array<i64: 16, 128>}, {transform_indices = @transform_2, window_bounds = array<i64: 1, 2, 8, 128>}]} {
    %c0_i32 = arith.constant 0 : i32
    %0 = arith.cmpi eq, %arg1, %c0_i32 : i32
    %1 = arith.extui %0 : i1 to i32
    %c0_i32_0 = arith.constant 0 : i32
    %2 = arith.cmpi ne, %1, %c0_i32_0 : i32
    scf.if %2 {
      %cst_32 = arith.constant 0.000000e+00 : f32
      %76 = vector.broadcast %cst_32 : f32 to vector<2x8x128xf32>
      %c0_33 = arith.constant 0 : index
      %c0_34 = arith.constant 0 : index
      %c0_35 = arith.constant 0 : index
      %77 = vector.load %arg5[%c0_33, %c0_34, %c0_35] : memref<2x8x128xf32, #tpu.memory_space<vmem>>, vector<2x8x128xf32>
      tpu.vector_store %arg5[%c0_33, %c0_34, %c0_35], %76 {strides = array<i32>} : memref<2x8x128xf32, #tpu.memory_space<vmem>>, vector<2x8x128xf32>,
    } else {
    }
    %c0 = arith.constant 0 : index
    %c0_1 = arith.constant 0 : index
    %3 = vector.load %arg2[%c0, %c0_1] : memref<16x128xf32, #tpu.memory_space<vmem>>, vector<16x128xf32>
    %c0_2 = arith.constant 0 : index
    %c0_3 = arith.constant 0 : index
    %4 = vector.load %arg3[%c0_2, %c0_3] : memref<16x128xf32, #tpu.memory_space<vmem>>, vector<16x128xf32>
    %c1_i32 = arith.constant 1 : i32
    %5 = arith.muli %arg0, %c1_i32 : i32
    %6 = arith.addi %5, %arg1 : i32
    %c16_i32 = arith.constant 16 : i32
    %7 = arith.muli %6, %c16_i32 : i32
    %c128_i32 = arith.constant 128 : i32
    %8 = arith.muli %7, %c128_i32 : i32
    %9 = tpu.iota {dimensions = array<i32: 0>} : vector<16x128xi32>
    %10 = tpu.iota {dimensions = array<i32: 1>} : vector<16x128xi32>
    %c128_i32_4 = arith.constant 128 : i32
    %11 = vector.broadcast %c128_i32_4 : i32 to vector<16x128xi32>
    %12 = arith.muli %9, %11 : vector<16x128xi32>
    %13 = vector.broadcast %8 : i32 to vector<16x128xi32>
    %14 = arith.addi %13, %12 : vector<16x128xi32>
    %15 = arith.addi %14, %10 : vector<16x128xi32>
    %c2048_i32 = arith.constant 2048 : i32
    %16 = vector.broadcast %c2048_i32 : i32 to vector<16x128xi32>
    %17 = arith.cmpi slt, %15, %16 : vector<16x128xi32>
    %18 = arith.cmpf one, %4, %4 : vector<16x128xf32>
    %cst = arith.constant dense<true> : vector<16x128xi1>
    %19 = arith.xori %18, %cst : vector<16x128xi1>
    %20 = arith.andi %17, %19 : vector<16x128xi1>
    %cst_5 = arith.constant 0.000000e+00 : f32
    %21 = vector.broadcast %cst_5 : f32 to vector<16x128xf32>
    %22 = arith.select %20, %4, %21 : vector<16x128xi1>, vector<16x128xf32>
    %cst_6 = arith.constant 5.000000e-01 : f32
    %23 = vector.broadcast %cst_6 : f32 to vector<16x128xf32>
    %24 = arith.select %20, %3, %23 : vector<16x128xi1>, vector<16x128xf32>
    %25 = math.log %24 : vector<16x128xf32>
    %cst_7 = arith.constant -1.000000e+02 : f32
    %26 = vector.broadcast %cst_7 : f32 to vector<16x128xf32>
    %27 = arith.maximumf %25, %26 : vector<16x128xf32>
    %cst_8 = arith.constant 1.000000e+00 : f32
    %28 = vector.broadcast %cst_8 : f32 to vector<16x128xf32>
    %29 = arith.subf %28, %24 : vector<16x128xf32>
    %30 = math.log %29 : vector<16x128xf32>
    %cst_9 = arith.constant -1.000000e+02 : f32
    %31 = vector.broadcast %cst_9 : f32 to vector<16x128xf32>
    %32 = arith.maximumf %30, %31 : vector<16x128xf32>
    %33 = arith.mulf %22, %27 : vector<16x128xf32>
    %cst_10 = arith.constant 1.000000e+00 : f32
    %34 = vector.broadcast %cst_10 : f32 to vector<16x128xf32>
    %35 = arith.subf %34, %22 : vector<16x128xf32>
    %36 = arith.mulf %35, %32 : vector<16x128xf32>
    %37 = arith.addf %33, %36 : vector<16x128xf32>
    %cst_11 = arith.constant 0.000000e+00 : f32
    %38 = vector.broadcast %cst_11 : f32 to vector<16x128xf32>
    %39 = arith.subf %38, %37 : vector<16x128xf32>
    %40 = arith.mulf %22, %24 : vector<16x128xf32>
    %cst_12 = arith.constant 1.000000e+00 : f32
    %41 = vector.broadcast %cst_12 : f32 to vector<16x128xf32>
    %42 = arith.subf %41, %22 : vector<16x128xf32>
    %cst_13 = arith.constant 1.000000e+00 : f32
    %43 = vector.broadcast %cst_13 : f32 to vector<16x128xf32>
    %44 = arith.subf %43, %24 : vector<16x128xf32>
    %45 = arith.mulf %42, %44 : vector<16x128xf32>
    %46 = arith.addf %40, %45 : vector<16x128xf32>
    %cst_14 = arith.constant 1.000000e+00 : f32
    %47 = vector.broadcast %cst_14 : f32 to vector<16x128xf32>
    %48 = arith.subf %47, %46 : vector<16x128xf32>
    %49 = arith.mulf %48, %48 : vector<16x128xf32>
    %cst_15 = arith.constant 2.500000e-01 : f32
    %50 = vector.broadcast %cst_15 : f32 to vector<16x128xf32>
    %51 = arith.mulf %50, %49 : vector<16x128xf32>
    %52 = arith.mulf %51, %39 : vector<16x128xf32>
    %cst_16 = arith.constant 0.000000e+00 : f32
    %53 = vector.broadcast %cst_16 : f32 to vector<16x128xf32>
    %54 = arith.select %20, %52, %53 : vector<16x128xi1>, vector<16x128xf32>
    %c0_17 = arith.constant 0 : index
    %c0_18 = arith.constant 0 : index
    %c0_19 = arith.constant 0 : index
    %55 = vector.load %arg5[%c0_17, %c0_18, %c0_19] : memref<2x8x128xf32, #tpu.memory_space<vmem>>, vector<1x8x128xf32>
    %56 = vector.shape_cast %55 : vector<1x8x128xf32> to vector<8x128xf32>
    %57 = vector.shape_cast %54 : vector<16x128xf32> to vector<2x8x128xf32>
    %cst_20 = arith.constant dense<0.000000e+00> : vector<8x128xf32>
    %58 = vector.multi_reduction <add>, %57, %cst_20 [0] : vector<2x8x128xf32> to vector<8x128xf32>
    %59 = arith.addf %56, %58 : vector<8x128xf32>
    %c0_21 = arith.constant 0 : index
    %c0_22 = arith.constant 0 : index
    %c0_23 = arith.constant 0 : index
    %60 = vector.load %arg5[%c0_21, %c0_22, %c0_23] : memref<2x8x128xf32, #tpu.memory_space<vmem>>, vector<1x8x128xf32>
    %61 = vector.shape_cast %60 : vector<1x8x128xf32> to vector<8x128xf32>
    %62 = vector.shape_cast %59 : vector<8x128xf32> to vector<1x8x128xf32>
    tpu.vector_store %arg5[%c0_21, %c0_22, %c0_23], %62 {strides = array<i32>} : memref<2x8x128xf32, #tpu.memory_space<vmem>>, vector<1x8x128xf32>,
    %c1 = arith.constant 1 : index
    %c0_24 = arith.constant 0 : index
    %c0_25 = arith.constant 0 : index
    %63 = vector.load %arg5[%c1, %c0_24, %c0_25] : memref<2x8x128xf32, #tpu.memory_space<vmem>>, vector<1x8x128xf32>
    %64 = vector.shape_cast %63 : vector<1x8x128xf32> to vector<8x128xf32>
    %65 = arith.extui %20 : vector<16x128xi1> to vector<16x128xi32>
    %66 = arith.sitofp %65 : vector<16x128xi32> to vector<16x128xf32>
    %67 = vector.shape_cast %66 : vector<16x128xf32> to vector<2x8x128xf32>
    %cst_26 = arith.constant dense<0.000000e+00> : vector<8x128xf32>
    %68 = vector.multi_reduction <add>, %67, %cst_26 [0] : vector<2x8x128xf32> to vector<8x128xf32>
    %69 = arith.addf %64, %68 : vector<8x128xf32>
    %c1_27 = arith.constant 1 : index
    %c0_28 = arith.constant 0 : index
    %c0_29 = arith.constant 0 : index
    %70 = vector.load %arg5[%c1_27, %c0_28, %c0_29] : memref<2x8x128xf32, #tpu.memory_space<vmem>>, vector<1x8x128xf32>
    %71 = vector.shape_cast %70 : vector<1x8x128xf32> to vector<8x128xf32>
    %72 = vector.shape_cast %69 : vector<8x128xf32> to vector<1x8x128xf32>
    tpu.vector_store %arg5[%c1_27, %c0_28, %c0_29], %72 {strides = array<i32>} : memref<2x8x128xf32, #tpu.memory_space<vmem>>, vector<1x8x128xf32>,
    %c0_i32_30 = arith.constant 0 : i32
    %73 = arith.cmpi eq, %arg1, %c0_i32_30 : i32
    %74 = arith.extui %73 : i1 to i32
    %c0_i32_31 = arith.constant 0 : i32
    %75 = arith.cmpi ne, %74, %c0_i32_31 : i32
    scf.if %75 {
      %c0_32 = arith.constant 0 : index
      %c0_33 = arith.constant 0 : index
      %c0_34 = arith.constant 0 : index
      %76 = vector.load %arg5[%c0_32, %c0_33, %c0_34] : memref<2x8x128xf32, #tpu.memory_space<vmem>>, vector<2x8x128xf32>
      %c0_35 = arith.constant 0 : index
      %c0_36 = arith.constant 0 : index
      %c0_37 = arith.constant 0 : index
      %c0_38 = arith.constant 0 : index
      %77 = vector.load %arg4[%c0_35, %c0_36, %c0_37, %c0_38] : memref<1x2x8x128xf32, #tpu.memory_space<vmem>>, vector<1x2x8x128xf32>
      %78 = vector.shape_cast %77 : vector<1x2x8x128xf32> to vector<2x8x128xf32>
      %79 = vector.shape_cast %76 : vector<2x8x128xf32> to vector<1x2x8x128xf32>
      tpu.vector_store %arg4[%c0_35, %c0_36, %c0_37, %c0_38], %79 {strides = array<i32>} : memref<1x2x8x128xf32, #tpu.memory_space<vmem>>, vector<1x2x8x128xf32>,
    } else {
    }
    return
  }
  func.func @transform_0(%arg0: i32, %arg1: i32) -> (i32, i32) {
    %c1_i32 = arith.constant 1 : i32
    %0 = arith.muli %arg0, %c1_i32 : i32
    %1 = arith.addi %0, %arg1 : i32
    %c0_i32 = arith.constant 0 : i32
    %2 = arith.minsi %1, %c0_i32 : i32
    %c0_i32_0 = arith.constant 0 : i32
    %c0_i32_1 = arith.constant 0 : i32
    return %2, %c0_i32_0 : i32, i32
  }
  func.func @transform_1(%arg0: i32, %arg1: i32) -> (i32, i32) {
    %c1_i32 = arith.constant 1 : i32
    %0 = arith.muli %arg0, %c1_i32 : i32
    %1 = arith.addi %0, %arg1 : i32
    %c0_i32 = arith.constant 0 : i32
    %2 = arith.minsi %1, %c0_i32 : i32
    %c0_i32_0 = arith.constant 0 : i32
    %c0_i32_1 = arith.constant 0 : i32
    return %2, %c0_i32_0 : i32, i32
  }
  func.func @transform_2(%arg0: i32, %arg1: i32) -> (i32, i32, i32, i32) {
    %c0_i32 = arith.constant 0 : i32
    %c0_i32_0 = arith.constant 0 : i32
    %c0_i32_1 = arith.constant 0 : i32
    %c0_i32_2 = arith.constant 0 : i32
    return %arg0, %c0_i32, %c0_i32_0, %c0_i32_1 : i32, i32, i32, i32
  }
}

</mosaic_0001>

<llo_original>
// kernel: bce_loss.1
$region0: #{bce_loss.1}
  #allocation0 [shape = 'u32[]', space=smem, size = 0x4, offset = 0x4, fixed_abs, tag = 'smem constant byte address 0x4 - core index']
  #allocation1 [shape = 'u32[144,128]{1,0:T(1,128)}', space=vmem, size = 0x12000, scoped, tag = 'internal scratch']
  #allocation2 [shape = 'f32[2,8,128]{2,1,0:T(8,128)}', space=vmem, size = 0x2000, scoped, tag = 'scratch operand']
  %s0 = inlined_call_operand.vmem [shape: f32[16,128], index: 0, kind: input, shape index: {}]
  %s1 = inlined_call_operand.vmem [shape: f32[16,128], index: 1, kind: input, shape index: {}]
  %s2 = inlined_call_operand.vmem [shape: f32[2,2,8,128], index: 2, kind: output, shape index: {}]
  %s3 = sld [smem:[#allocation0]]
  $region49: #{bce_loss.1} parent=0
    _
  %s5 = ssub.s32 1, %s3
  %s6 = scalar_select 0, %s5, %s3
  loop: start=0, step=1, limit=4
  $region2: #{bce_loss.1} parent=0 // loop_pre_header
    _
  $region3: #{bce_loss.1} parent=0 // loop_header
    %s8 = sphi 0, %s12
    %p9 = scmp.ge.s32.totalorder %s8, 4
    %s15 = sphi 0, %s27
    %s16 = sphi 0, %s23
    %s17 = sphi 0, %s15
    %s18 = sphi 0, %s16
    %s19 = sphi 0, %s17
    %s20 = sphi 0, %s18
    %s36 = sphi 0, %s38
    %s39 = sphi 0, %s36
    %s40 = sphi 0, %s39
    %s56 = sphi 0, %s40
    %s68 = sphi 0, %s70
    %s71 = sphi 0, %s68
    %s72 = sphi 0, %s71
    %s88 = sphi 0, %s72
    %s94 = sphi 0, %s96
    %s97 = sphi 0, %s94
    %s98 = sphi 0, %s97
    %s114 = sphi 0, %s98
  $region4: #{bce_loss.1} parent=0 // loop_header_branch
    %11 = sbr.rel (%p9) target = $region8
  $region5: #{bce_loss.1} parent=0 // loop_body
    %s13 = ssub.s32 %s8, 1
    %s14 = ssub.s32 %s8, 2
    %s21 = sadd.s32 1, %s16
    %p22 = scmp.ge.s32.totalorder %s21, 1
    %s23 = scalar_select %p22, 0, %s21
    %s24 = sadd.s32 1, %s15
    %s25 = scalar_select %p22, %s24, %s15
    %p26 = scmp.ge.s32.totalorder %s25, 2
    %s27 = scalar_select %p26, 0, %s25
    %s28 = sadd.s32 %s15, %s16
    %p29 = scmp.lt.s32.totalorder %s28, 0
    %s30 = scalar_select %p29, %s28, 0
    %s31 = sadd.s32 %s27, %s23
    %p32 = scmp.lt.s32.totalorder %s31, 0
    %s33 = scalar_select %p32, %s31, 0
    %s34 = ssub.s32 %s30, %s33
    %p35 = scmp.eq.s32.totalorder %s34, 0
    %s37 = sadd.s32 %s36, 1
    %s38 = scalar_select %p35, %s36, %s37
    %p41 = pneg %p35
    %p42 = scmp.eq.s32.totalorder %s8, 1
    %p43 = por %p41, %p42
    %p44 = scmp.ne.s32.totalorder %s36, %s39
    %p45 = scmp.eq.s32.totalorder %s8, 0
    %p46 = por %p44, %p45
    %p47 = scmp.ne.s32.totalorder %s36, %s39
    %p48 = scmp.eq.s32.totalorder %s13, 1
    %p49 = por %p47, %p48
    %p50 = scmp.ne.s32.totalorder %s39, %s40
    %p51 = scmp.eq.s32.totalorder %s13, 0
    %p52 = por %p50, %p51
    %p53 = scmp.ne.s32.totalorder %s39, %s40
    %p54 = scmp.eq.s32.totalorder %s14, 1
    %p55 = por %p53, %p54
    %p57 = scmp.ne.s32.totalorder %s40, %s56
    %p58 = scmp.eq.s32.totalorder %s14, 0
    %p59 = por %p57, %p58
    %s60 = sadd.s32 %s15, %s16
    %p61 = scmp.lt.s32.totalorder %s60, 0
    %s62 = scalar_select %p61, %s60, 0
    %s63 = sadd.s32 %s27, %s23
    %p64 = scmp.lt.s32.totalorder %s63, 0
    %s65 = scalar_select %p64, %s63, 0
    %s66 = ssub.s32 %s62, %s65
    %p67 = scmp.eq.s32.totalorder %s66, 0
    %s69 = sadd.s32 %s68, 1
    %s70 = scalar_select %p67, %s68, %s69
    %p73 = pneg %p67
    %p74 = scmp.eq.s32.totalorder %s8, 1
    %p75 = por %p73, %p74
    %p76 = scmp.ne.s32.totalorder %s68, %s71
    %p77 = scmp.eq.s32.totalorder %s8, 0
    %p78 = por %p76, %p77
    %p79 = scmp.ne.s32.totalorder %s68, %s71
    %p80 = scmp.eq.s32.totalorder %s13, 1
    %p81 = por %p79, %p80
    %p82 = scmp.ne.s32.totalorder %s71, %s72
    %p83 = scmp.eq.s32.totalorder %s13, 0
    %p84 = por %p82, %p83
    %p85 = scmp.ne.s32.totalorder %s71, %s72
    %p86 = scmp.eq.s32.totalorder %s14, 1
    %p87 = por %p85, %p86
    %p89 = scmp.ne.s32.totalorder %s72, %s88
    %p90 = scmp.eq.s32.totalorder %s14, 0
    %p91 = por %p89, %p90
    %s92 = ssub.s32 %s15, %s27
    %p93 = scmp.eq.s32.totalorder %s92, 0
    %s95 = sadd.s32 %s94, 1
    %s96 = scalar_select %p93, %s94, %s95
    %p99 = pneg %p93
    %p100 = scmp.eq.s32.totalorder %s8, 1
    %p101 = por %p99, %p100
    %p102 = scmp.ne.s32.totalorder %s94, %s97
    %p103 = scmp.eq.s32.totalorder %s8, 0
    %p104 = por %p102, %p103
    %p105 = scmp.ne.s32.totalorder %s94, %s97
    %p106 = scmp.eq.s32.totalorder %s13, 1
    %p107 = por %p105, %p106
    %p108 = scmp.ne.s32.totalorder %s97, %s98
    %p109 = scmp.eq.s32.totalorder %s13, 0
    %p110 = por %p108, %p109
    %p111 = scmp.ne.s32.totalorder %s97, %s98
    %p112 = scmp.eq.s32.totalorder %s14, 1
    %p113 = por %p111, %p112
    %p115 = scmp.ne.s32.totalorder %s98, %s114
    %p116 = scmp.eq.s32.totalorder %s14, 0
    %p117 = por %p115, %p116
    %p118 = scmp.le.s32.totalorder 1, %s8
    %p119 = scmp.lt.s32.totalorder %s8, 3
    %p120 = pnand %p118, %p119
    %p121 = pneg %p120
    // Predicated region
    $region9: #{bce_loss.1} parent=5 // pred_check
      _
    $region10: #{bce_loss.1} parent=5 // pred_check_branch
      %123 = sbr.rel (%p120) target = $region12
    $region11: #{bce_loss.1} parent=5 // pred_region
      %s124 = ssub.s32 %s8, 1
    $region12: #{bce_loss.1} parent=5 // pred_fallthru
      _
    %p125 = scmp.lt.s32.totalorder %s8, 2
    // Predicated region
    $region13: #{bce_loss.1} parent=5 // pred_check
      %p126 = pneg %p125
    $region14: #{bce_loss.1} parent=5 // pred_check_branch
      %128 = sbr.rel (%p126) target = $region16
    $region15: #{bce_loss.1} parent=5 // pred_region
      // Predicated region
      $region17: #{bce_loss.1} parent=15 // pred_check
        %p129 = pneg %p46
      $region18: #{bce_loss.1} parent=15 // pred_check_branch
        %131 = sbr.rel (%p129) target = $region20
      $region19: #{bce_loss.1} parent=15 // pred_region
        %s132 = sadd.s32 %s15, %s16
        %p133 = scmp.lt.s32.totalorder %s132, 0
        %s134 = scalar_select %p133, %s132, 0
        %s135 = smul.u32 2, %s134
        %p136 = scmp.lt.s32.totalorder %s135, 1
        %s137 = scalar_select %p136, %s135, 1
        %s138 = smul.addr %s137, 8
        %s139 = scalar_lea.vmem %s0, %s138
        %s140 = sadd.s32 %s15, %s16
        %p141 = scmp.lt.s32.totalorder %s140, 0
        %s142 = scalar_select %p141, %s140, 0
        %s143 = smul.u32 2, %s142
      $region20: #{bce_loss.1} parent=15 // pred_fallthru
        _
      // Predicated region
      $region21: #{bce_loss.1} parent=15 // pred_check
        %p144 = pneg %p78
      $region22: #{bce_loss.1} parent=15 // pred_check_branch
        %146 = sbr.rel (%p144) target = $region24
      $region23: #{bce_loss.1} parent=15 // pred_region
        %s147 = sadd.s32 %s15, %s16
        %p148 = scmp.lt.s32.totalorder %s147, 0
        %s149 = scalar_select %p148, %s147, 0
        %s150 = smul.u32 2, %s149
        %p151 = scmp.lt.s32.totalorder %s150, 1
        %s152 = scalar_select %p151, %s150, 1
        %s153 = smul.addr %s152, 8
        %s154 = scalar_lea.vmem %s1, %s153
        %s155 = sadd.s32 %s15, %s16
        %p156 = scmp.lt.s32.totalorder %s155, 0
        %s157 = scalar_select %p156, %s155, 0
        %s158 = smul.u32 2, %s157
      $region24: #{bce_loss.1} parent=15 // pred_fallthru
        _
    $region16: #{bce_loss.1} parent=5 // pred_fallthru
      _
    %p159 = scmp.le.s32.totalorder 1, %s8
    %p160 = scmp.lt.s32.totalorder %s8, 3
    %p161 = pnand %p159, %p160
    %p162 = pneg %p161
    // Predicated region
    $region25: #{bce_loss.1} parent=5 // pred_check
      _
    $region26: #{bce_loss.1} parent=5 // pred_check_branch
      %164 = sbr.rel (%p161) target = $region28
    $region27: #{bce_loss.1} parent=5 // pred_region
      %s165 = ssub.s32 %s8, 1
      %s166 = sadd.s32 %s17, %s18
      %p167 = scmp.lt.s32.totalorder %s166, 0
      %s168 = scalar_select %p167, %s166, 0
      %s169 = smul.u32 2, %s168
      %p170 = scmp.lt.s32.totalorder %s169, 1
      %s171 = scalar_select %p170, %s169, 1
      %s172 = smul.addr %s171, 8
      %s173 = scalar_lea.vmem %s0, %s172
      %p174 = pneg %p52
      %p175 = pneg %p49
      %s176 = sadd.s32 %s17, %s18
      %p177 = scmp.lt.s32.totalorder %s176, 0
      %s178 = scalar_select %p177, %s176, 0
      %s179 = smul.u32 2, %s178
      %p180 = scmp.lt.s32.totalorder %s179, 1
      %s181 = scalar_select %p180, %s179, 1
      %s182 = smul.addr %s181, 8
      %s183 = scalar_lea.vmem %s1, %s182
      %p184 = pneg %p84
      %p185 = pneg %p81
      %p186 = pneg %p110
      %p187 = pneg %p107
      %p188 = scmp.lt.s32.totalorder %s17, 1
      %s189 = scalar_select %p188, %s17, 1
      %s190 = smul.addr %s189, 2
      %s191 = smul.addr %s190, 8
      %s192 = scalar_lea.vmem %s2, %s191
      %s193 = sadd.s32 %s17, %s18
      %p194 = scmp.lt.s32.totalorder %s193, 0
      %s195 = scalar_select %p194, %s193, 0
      %s196 = smul.u32 2, %s195
      %p197 = scmp.lt.s32.totalorder %s196, 1
      %s198 = scalar_select %p197, %s196, 1
      %s199 = smul.addr %s198, 8
      %s200 = scalar_lea.vmem %s0, %s199
      %s201 = sadd.s32 %s17, %s18
      %p202 = scmp.lt.s32.totalorder %s201, 0
      %s203 = scalar_select %p202, %s201, 0
      %s204 = smul.u32 2, %s203
      %s205 = sadd.s32 %s17, %s18
      %p206 = scmp.lt.s32.totalorder %s205, 0
      %s207 = scalar_select %p206, %s205, 0
      %s208 = smul.u32 2, %s207
      %p209 = scmp.lt.s32.totalorder %s208, 1
      %s210 = scalar_select %p209, %s208, 1
      %s211 = smul.addr %s210, 8
      %s212 = scalar_lea.vmem %s1, %s211
      %s213 = sadd.s32 %s17, %s18
      %p214 = scmp.lt.s32.totalorder %s213, 0
      %s215 = scalar_select %p214, %s213, 0
      %s216 = smul.u32 2, %s215
      %p217 = scmp.lt.s32.totalorder %s17, 1
      %s218 = scalar_select %p217, %s17, 1
      %s219 = smul.addr %s218, 2
      %s220 = smul.addr %s219, 8
      %s221 = scalar_lea.vmem %s2, %s220
      %p222 = scmp.eq.s32.totalorder %s18, 0
      // Predicated region
      $region29: #{bce_loss.1} parent=27 // pred_check
        %p223 = pneg %p222
      $region30: #{bce_loss.1} parent=27 // pred_check_branch
        %225 = sbr.rel (%p223) target = $region32
      $region31: #{bce_loss.1} parent=27 // pred_region
        %226 = vst [vmem:[#allocation2] sm:$0xff] 0.0
        %227 = vst [vmem:[#allocation2 + $0x8] sm:$0xff] 0.0
      $region32: #{bce_loss.1} parent=27 // pred_fallthru
        _
      %v228 = vld [vmem:[%s200] sm:$0xff]
      %v229 = vld [vmem:[%s200 + $0x8] sm:$0xff]
      %v230 = vld [vmem:[%s212] sm:$0xff]
      %v231 = vld [vmem:[%s212 + $0x8] sm:$0xff]
      %s232 = sadd.s32 %s17, %s18
      %s233 = smul.u32 %s232, 2048
      %v234 = vlaneseq
      %v235 = vshrl.u32 %v234, 7
      %v236 = vadd.s32 %v235, 8
      %v237 = vlaneseq
      %v238 = vand.u32 %v237, 127
      %v239 = vmul.u32 %v235, 128
      %v240 = vmul.u32 %v236, 128
      %v241 = vstv %s233
      %v242 = vadd.s32 %v241, %v239
      %v243 = vadd.s32 %v241, %v240
      %v244 = vadd.s32 %v242, %v238
      %v245 = vadd.s32 %v243, %v238
      %vm246 = vcmp.lt.s32.totalorder %v244, 2048
      %vm247 = vcmp.lt.s32.totalorder %v245, 2048
      %vm248 = vcmp.ne.f32.partialorder %v230, %v230
      %vm249 = vcmp.ne.f32.partialorder %v231, %v231
      %vm250 = vmxor %vm248, 1
      %vm251 = vmxor %vm249, 1
      %vm252 = vmand %vm246, %vm250
      %vm253 = vmand %vm247, %vm251
      %v254 = vsel %vm252, %v230, 0.0
      %v255 = vsel %vm253, %v231, 0.0
      %v256 = vsel %vm252, %v228, 0.5
      %v257 = vsel %vm253, %v229, 0.5
      %v258 = vlog2.pop %v256
      %v259 = vmul.f32 %v258, 0.6931472
      %v260 = vlog2.pop %v257
      %v261 = vmul.f32 %v260, 0.6931472
      %v262 = vmax.f32 %v259, -100.0
      %v263 = vmax.f32 %v261, -100.0
      %v264 = vsub.f32 1.0, %v256
      %v265 = vsub.f32 1.0, %v257
      %v266 = vlog2.pop %v264
      %v267 = vmul.f32 %v266, 0.6931472
      %v268 = vlog2.pop %v265
      %v269 = vmul.f32 %v268, 0.6931472
      %v270 = vmax.f32 %v267, -100.0
      %v271 = vmax.f32 %v269, -100.0
      %v272 = vmul.f32 %v254, %v262
      %v273 = vmul.f32 %v255, %v263
      %v274 = vsub.f32 1.0, %v254
      %v275 = vsub.f32 1.0, %v255
      %v276 = vmul.f32 %v274, %v270
      %v277 = vmul.f32 %v275, %v271
      %v278 = vadd.f32 %v272, %v276
      %v279 = vadd.f32 %v273, %v277
      %v280 = vsub.f32 0.0, %v278
      %v281 = vsub.f32 0.0, %v279
      %v282 = vmul.f32 %v254, %v256
      %v283 = vmul.f32 %v255, %v257
      %v284 = vmul.f32 %v274, %v264
      %v285 = vmul.f32 %v275, %v265
      %v286 = vadd.f32 %v282, %v284
      %v287 = vadd.f32 %v283, %v285
      %v288 = vsub.f32 1.0, %v286
      %v289 = vsub.f32 1.0, %v287
      %v290 = vmul.f32 %v288, %v288
      %v291 = vmul.f32 %v289, %v289
      %v292 = vmul.f32 %v290, 0.25
      %v293 = vmul.f32 %v291, 0.25
      %v294 = vmul.f32 %v292, %v280
      %v295 = vmul.f32 %v293, %v281
      %v296 = vsel %vm252, %v294, 0.0
      %v297 = vsel %vm253, %v295, 0.0
      %v298 = vld [vmem:[#allocation2] sm:$0xff]
      %v299 = vadd.f32 %v296, %v297
      %v300 = vadd.f32 %v298, %v299
      %301 = vst [vmem:[#allocation2] sm:$0xff] %v300
      %s302 = scalar_lea.vmem [#allocation2], 8
      %v303 = vld [vmem:[%s302] sm:$0xff]
      %v304 = vsel %vm252, 1, 0
      %v305 = vsel %vm253, 1, 0
      %v306 = vcvt.s32.f32 %v304
      %v307 = vcvt.s32.f32 %v305
      %v308 = vadd.f32 %v306, %v307
      %v309 = vadd.f32 %v303, %v308
      %310 = vst [vmem:[%s302] sm:$0xff] %v309
      // Predicated region
      $region33: #{bce_loss.1} parent=27 // pred_check
        %p311 = pneg %p222
      $region34: #{bce_loss.1} parent=27 // pred_check_branch
        %313 = sbr.rel (%p311) target = $region36
      $region35: #{bce_loss.1} parent=27 // pred_region
        %v314 = vld [vmem:[#allocation2] sm:$0xff]
        %v315 = vld [vmem:[#allocation2 + $0x8] sm:$0xff]
        %316 = vst [vmem:[%s221] sm:$0xff] %v314
        %317 = vst [vmem:[%s221 + $0x8] sm:$0xff] %v315
      $region36: #{bce_loss.1} parent=27 // pred_fallthru
        _
      %p318 = scmp.lt.s32.totalorder %s17, 1
      %s319 = scalar_select %p318, %s17, 1
      %s320 = smul.addr %s319, 2
      %s321 = smul.addr %s320, 8
      %s322 = scalar_lea.vmem %s2, %s321
      // Predicated region
      $region37: #{bce_loss.1} parent=27 // pred_check
        %p323 = pneg %p107
      $region38: #{bce_loss.1} parent=27 // pred_check_branch
        %325 = sbr.rel (%p323) target = $region40
      $region39: #{bce_loss.1} parent=27 // pred_region
        _
      $region40: #{bce_loss.1} parent=27 // pred_fallthru
        _
    $region28: #{bce_loss.1} parent=5 // pred_fallthru
      _
    %p326 = scmp.le.s32.totalorder 2, %s8
    // Predicated region
    $region41: #{bce_loss.1} parent=5 // pred_check
      %p327 = pneg %p326
    $region42: #{bce_loss.1} parent=5 // pred_check_branch
      %329 = sbr.rel (%p327) target = $region44
    $region43: #{bce_loss.1} parent=5 // pred_region
      %s330 = ssub.s32 %s8, 2
      // Predicated region
      $region45: #{bce_loss.1} parent=43 // pred_check
        %p331 = pneg %p113
      $region46: #{bce_loss.1} parent=43 // pred_check_branch
        %333 = sbr.rel (%p331) target = $region48
      $region47: #{bce_loss.1} parent=43 // pred_region
        %p334 = scmp.lt.s32.totalorder %s19, 1
        %s335 = scalar_select %p334, %s19, 1
        %s336 = smul.addr %s335, 2
        %s337 = smul.addr %s336, 8
        %s338 = scalar_lea.vmem %s2, %s337
      $region48: #{bce_loss.1} parent=43 // pred_fallthru
        _
    $region44: #{bce_loss.1} parent=5 // pred_fallthru
      _
  $region6: #{bce_loss.1} parent=0 // loop_footer
    %s12 = sadd.s32 1, %s8
  $region7: #{bce_loss.1} parent=0 // loop_footer_branch
    %7 = sbr.rel target = $region3
  $region8: #{bce_loss.1} parent=0 // loop_exit
    _

</llo_original>
